<compile_context>
chip_gen: v6e
topology: v6e:2x2x1
jax: 0.10.0
libtpu: 0.0.40
codegen_flags: <defaults>
</compile_context>

<pallas_src>
import functools

import jax
import jax.numpy as jnp
from jax import lax
from jax.experimental import pallas as pl
from jax.experimental.pallas import tpu as pltpu


def _attn_kernel(x_ref, w_ref, b_ref, o_ref, *, hp, h):
    # x_ref: (Bb, T, C) f32 input block
    # w_ref: (C, 3*Hp) bf16 fused [Wq*scale | Wk | Wv] (pre-transposed, zero-padded)
    # b_ref: (1, 3*Hp) f32 fused [bq*scale | bk | bv] (zero-padded)
    # o_ref: (Bb, T, H) output block (H-wide, unpadded)
    bb, t, c = x_ref.shape

    # --- Fused QKV projection: bf16 operands, f32 accumulation on the MXU ---
    xb = x_ref[...].astype(jnp.bfloat16)
    wb = w_ref[...]                                           # already bf16
    if t % 8 == 0:
        # one tall (Bb*T, C) @ (C, 3Hp) matmul; reshape is sublane-aligned
        qkv = jnp.dot(xb.reshape(bb * t, c), wb,
                      preferred_element_type=jnp.float32) + b_ref[...]
        qkv = qkv.reshape(bb, t, 3 * hp)
    else:
        # avoid a sublane-relayout reshape when T is not a multiple of 8
        qkv = jnp.einsum('btc,cd->btd', xb, wb,
                         preferred_element_type=jnp.float32) + b_ref[...]

    # Lane-aligned (multiples of 128) slices; scale is pre-folded into Wq/bq.
    q = qkv[:, :, 0 * hp:1 * hp].astype(jnp.bfloat16)
    k = qkv[:, :, 1 * hp:2 * hp].astype(jnp.bfloat16)
    v = qkv[:, :, 2 * hp:3 * hp].astype(jnp.bfloat16)

    # Scores: contract last dims directly (no physical k transpose / XLU pass;
    # this is the same contraction form Mosaic handles natively in flash-attn).
    s = jnp.einsum('bqd,bkd->bqk', q, k,
                   preferred_element_type=jnp.float32)        # (Bb, T, T) f32

    # torch: qk = qk * tril; qk = masked_fill(qk == 0, -inf)
    # == -inf wherever col > row OR the (visible) score is exactly zero.
    # 2-D mask built once, broadcast over the batch block.
    row = lax.broadcasted_iota(jnp.int32, (t, t), 0)
    col = lax.broadcasted_iota(jnp.int32, (t, t), 1)
    causal = col > row                                        # (T, T) bool
    s = jnp.where(causal[None, :, :] | (s == 0.0), -jnp.inf, s)

    # Row-wise softmax in f32; reciprocal on the (otherwise idle) EUP slot,
    # with one Newton step to recover ~f32 accuracy.
    m = jnp.max(s, axis=-1, keepdims=True)
    e = jnp.exp(s - m)
    den = jnp.sum(e, axis=-1, keepdims=True)
    r = pl.reciprocal(den, approx=True)
    r = r * (2.0 - den * r)                                   # Newton refinement
    p = (e * r).astype(jnp.bfloat16)

    # Attention output (padded v columns are exact zeros); store H-wide.
    out = jnp.einsum('bqk,bkd->bqd', p, v,
                     preferred_element_type=jnp.float32)      # (Bb, T, Hp) f32
    o_ref[...] = out[:, :, :h].astype(o_ref.dtype)


def fuse_qkv_params(wq, bq, wk, bk, wv, bv, *, embed_size_h):
    """One-time (model-init) fusion: torch-style (H, C) Linear params ->
    a single (C, 3*Hp) bf16 weight and (1, 3*Hp) f32 bias, with the softmax
    scale folded into the Q projection and the head dim zero-padded to 128."""
    H = int(embed_size_h)
    C = wq.shape[1]
    scale = float(H) ** -0.5
    Hp = 128 * ((H + 127) // 128)

    def pad_w(w, s=1.0):
        wt = jnp.asarray(w, jnp.float32).T * s                # (C, H)
        return jnp.pad(wt, ((0, 0), (0, Hp - H)))

    def pad_b(b, s=1.0):
        return jnp.pad(jnp.asarray(b, jnp.float32) * s, (0, Hp - H))

    w_qkv = jnp.concatenate([pad_w(wq, scale), pad_w(wk), pad_w(wv)],
                            axis=1).astype(jnp.bfloat16)      # (C, 3Hp) bf16
    b_qkv = jnp.concatenate([pad_b(bq, scale), pad_b(bk), pad_b(bv)]
                            ).reshape(1, 3 * Hp)              # (1, 3Hp) f32
    return w_qkv, b_qkv


def attention_layer(x, w_qkv, b_qkv, *, embed_size_h, block_b=None):
    """x: (B, T, C) f32; w_qkv/b_qkv from fuse_qkv_params."""
    B, T, C = x.shape
    H = int(embed_size_h)
    Hp = w_qkv.shape[1] // 3

    # --- VMEM-aware batch-block sizing (v7x: 64 MiB; v5e/v6e: 128 MiB) ------
    try:
        vmem_cap = int(pltpu.get_tpu_info().vmem_capacity_bytes)
    except Exception:
        vmem_cap = 64 * 1024 * 1024                           # conservative (v7x)
    budget = int(vmem_cap * 0.45)                             # headroom for scratch

    def vmem_bytes(bb):
        x_blk = 2 * bb * T * C * 4                            # double-buffered input
        o_blk = 2 * bb * T * H * 4                            # double-buffered output
        w_res = C * 3 * Hp * 2 + 3 * Hp * 4                   # resident bf16 W + f32 b
        interm = bb * T * 3 * Hp * 4 + 4 * bb * T * T * 4     # qkv + s/e/p/out (f32)
        return x_blk + o_blk + w_res + interm

    # Target bb*T >= 512 rows (feeds the 256-tall v6e/v7x MXU), clamp to VMEM,
    # and keep >= 2 grid steps when B >= 2 so ("parallel",) shards across
    # v7x's two TensorCores.
    bb = pl.cdiv(512, T) if block_b is None else int(block_b)
    bb = max(1, min(bb, B))
    while bb > 1 and vmem_bytes(bb) > budget:
        bb -= 1
    if B >= 2:
        bb = min(bb, pl.cdiv(B, 2))

    # cdiv grid with a padded (zero) tail batch — no block_b degradation for
    # awkward B; the padded rows are sliced off below.
    Bp = pl.cdiv(B, bb) * bb
    xp = jnp.pad(x, ((0, Bp - B), (0, 0), (0, 0))) if Bp != B else x
    grid = (Bp // bb,)

    vmem_limit = int(min(vmem_cap * 0.9,
                         max(vmem_bytes(bb) * 3, 32 * 1024 * 1024)))

    kernel = functools.partial(_attn_kernel, hp=Hp, h=H)

    def build(single_buffer_resident):
        # Grid-invariant fused W/b: a single VMEM buffer is enough.
        res_kw = ({"pipeline_mode": pl.Buffered(1)}
                  if single_buffer_resident else {})
        grid_spec = pltpu.PrefetchScalarGridSpec(
            num_scalar_prefetch=0,
            grid=grid,
            in_specs=[
                pl.BlockSpec((bb, T, C), lambda i: (i, 0, 0)),          # x block
                pl.BlockSpec((C, 3 * Hp), lambda i: (0, 0), **res_kw),  # fused W
                pl.BlockSpec((1, 3 * Hp), lambda i: (0, 0), **res_kw),  # fused b
            ],
            out_specs=pl.BlockSpec((bb, T, H), lambda i: (i, 0, 0)),
        )
        return pl.pallas_call(
            kernel,
            out_shape=jax.ShapeDtypeStruct((Bp, T, H), x.dtype),
            grid_spec=grid_spec,
            compiler_params=pltpu.CompilerParams(
                dimension_semantics=("parallel",),
                vmem_limit_bytes=vmem_limit),
        )

    try:
        out = jax.block_until_ready(build(True)(xp, w_qkv, b_qkv))
    except Exception:
        # Fallback: default double-buffered resident operands.
        out = jax.block_until_ready(build(False)(xp, w_qkv, b_qkv))

    return out[:B] if Bp != B else out


def _reference(x, wq, bq, wk, bk, wv, bv, embed_size_h):
    # pure-JAX f32 reference mirroring the PyTorch forward
    q = x @ wq.T + bq
    k = x @ wk.T + bk
    v = x @ wv.T + bv
    qk = jnp.einsum('btd,bsd->bts', q, k) * (float(embed_size_h) ** -0.5)
    T = x.shape[1]
    tril = jnp.tril(jnp.ones((T, T), x.dtype))
    qk = qk * tril
    qk = jnp.where(qk == 0.0, -jnp.inf, qk)
    smax = jax.nn.softmax(qk, axis=-1)
    return smax @ v


if __name__ == "__main__":
    B, T, C, H = 2, 8, 32, 16          # batch, seq, embed_size, embed_size_h
    key = jax.random.PRNGKey(0)
    kx, kq, kqb, kk, kkb, kv, kvb = jax.random.split(key, 7)

    x = jax.random.normal(kx, (B, T, C), dtype=jnp.float32)

    # deterministic Linear params (torch-style: W is (out, in), uniform +-1/sqrt(in))
    bound = 1.0 / (C ** 0.5)
    wq = jax.random.uniform(kq,  (H, C), jnp.float32, -bound, bound)
    bq = jax.random.uniform(kqb, (H,),   jnp.float32, -bound, bound)
    wk = jax.random.uniform(kk,  (H, C), jnp.float32, -bound, bound)
    bk = jax.random.uniform(kkb, (H,),   jnp.float32, -bound, bound)
    wv = jax.random.uniform(kv,  (H, C), jnp.float32, -bound, bound)
    bv = jax.random.uniform(kvb, (H,),   jnp.float32, -bound, bound)

    # One-time fusion (model-init cost, not per forward call).
    w_qkv, b_qkv = fuse_qkv_params(wq, bq, wk, bk, wv, bv, embed_size_h=H)

    out = attention_layer(x, w_qkv, b_qkv, embed_size_h=H)
    out = jax.block_until_ready(out)

    ref = _reference(x, wq, bq, wk, bk, wv, bv, H)
    assert out.shape == (B, T, H)
    # bf16 MXU operands (f32 accumulation) => relaxed tolerance vs. f32 reference.
    assert jnp.allclose(out, ref, atol=2e-2, rtol=2e-2), "mismatch vs reference"

    print("KERNEL_OK")
</pallas_src>

<mosaic_0001>
module attributes {stable_mosaic.version = 11 : i64} {
  func.func @_attn_kernel(%arg0: i32, %arg1: memref<1x8x32xf32, #tpu.memory_space<vmem>>, %arg2: memref<32x384xbf16, #tpu.memory_space<vmem>>, %arg3: memref<1x384xf32, #tpu.memory_space<vmem>>, %arg4: memref<1x8x16xf32, #tpu.memory_space<vmem>>) attributes {dimension_semantics = [#tpu.dimension_semantics<parallel>], iteration_bounds = array<i64: 2>, scalar_prefetch = 0 : i64, scratch_operands = 0 : i64, tpu.core_type = #tpu.core_type<tc>, window_params = [{transform_indices = @transform_0, window_bounds = array<i64: 1, 8, 32>}, {pipeline_mode = #tpu.pipeline_mode<synchronous>, transform_indices = @transform_1, window_bounds = array<i64: 32, 384>}, {pipeline_mode = #tpu.pipeline_mode<synchronous>, transform_indices = @transform_2, window_bounds = array<i64: 1, 384>}, {transform_indices = @transform_3, window_bounds = array<i64: 1, 8, 16>}]} {
    %c0 = arith.constant 0 : index
    %c0_0 = arith.constant 0 : index
    %c0_1 = arith.constant 0 : index
    %0 = vector.load %arg1[%c0, %c0_0, %c0_1] : memref<1x8x32xf32, #tpu.memory_space<vmem>>, vector<1x8x32xf32>
    %1 = arith.truncf %0 : vector<1x8x32xf32> to vector<1x8x32xbf16>
    %c0_2 = arith.constant 0 : index
    %c0_3 = arith.constant 0 : index
    %2 = vector.load %arg2[%c0_2, %c0_3] : memref<32x384xbf16, #tpu.memory_space<vmem>>, vector<32x384xbf16>
    %3 = vector.shape_cast %1 : vector<1x8x32xbf16> to vector<8x32xbf16>
    %cst = arith.constant dense<0.000000e+00> : vector<8x384xf32>
    %4 = tpu.matmul %3, %2, %cst {dimension_numbers = #tpu.dot_dimension_numbers<[1], [0], [0], [1], [0, 0, 1, 1], [], []>} : vector<8x32xbf16>, vector<32x384xbf16>, vector<8x384xf32> -> vector<8x384xf32>
    %c0_4 = arith.constant 0 : index
    %c0_5 = arith.constant 0 : index
    %5 = vector.load %arg3[%c0_4, %c0_5] : memref<1x384xf32, #tpu.memory_space<vmem>>, vector<1x384xf32>
    %6 = vector.broadcast %5 : vector<1x384xf32> to vector<8x384xf32>
    %7 = arith.addf %4, %6 : vector<8x384xf32>
    %8 = vector.shape_cast %7 : vector<8x384xf32> to vector<1x8x384xf32>
    %9 = vector.extract_strided_slice %8 {offsets = [0, 0, 0], sizes = [1, 8, 128], strides = [1, 1, 1]} : vector<1x8x384xf32> to vector<1x8x128xf32>
    %10 = arith.truncf %9 : vector<1x8x128xf32> to vector<1x8x128xbf16>
    %11 = vector.extract_strided_slice %8 {offsets = [0, 0, 128], sizes = [1, 8, 128], strides = [1, 1, 1]} : vector<1x8x384xf32> to vector<1x8x128xf32>
    %12 = arith.truncf %11 : vector<1x8x128xf32> to vector<1x8x128xbf16>
    %13 = vector.extract_strided_slice %8 {offsets = [0, 0, 256], sizes = [1, 8, 128], strides = [1, 1, 1]} : vector<1x8x384xf32> to vector<1x8x128xf32>
    %14 = arith.truncf %13 : vector<1x8x128xf32> to vector<1x8x128xbf16>
    "tpu.trace_start"() <{level = 10 : i32, message = "bqd,bkd->bqk"}> : () -> ()
    %cst_6 = arith.constant dense<0.000000e+00> : vector<1x8x8xf32>
    %15 = tpu.matmul %10, %12, %cst_6 {dimension_numbers = #tpu.dot_dimension_numbers<[2], [2], [1], [1], [0, 0, 0, 1, 1, 1], [0], [0]>} : vector<1x8x128xbf16>, vector<1x8x128xbf16>, vector<1x8x8xf32> -> vector<1x8x8xf32>
    "tpu.trace_stop"() : () -> ()
    %16 = tpu.iota {dimensions = array<i32: 0>} : vector<8x8xi32>
    %17 = tpu.iota {dimensions = array<i32: 1>} : vector<8x8xi32>
    %18 = arith.cmpi sgt, %17, %16 : vector<8x8xi32>
    %19 = vector.shape_cast %18 : vector<8x8xi1> to vector<1x8x8xi1>
    %cst_7 = arith.constant 0.000000e+00 : f32
    %20 = vector.broadcast %cst_7 : f32 to vector<1x8x8xf32>
    %21 = arith.cmpf oeq, %15, %20 : vector<1x8x8xf32>
    %22 = arith.ori %19, %21 : vector<1x8x8xi1>
    %cst_8 = arith.constant 0xFF800000 : f32
    %23 = vector.broadcast %cst_8 : f32 to vector<1x8x8xf32>
    %24 = arith.select %22, %23, %15 : vector<1x8x8xi1>, vector<1x8x8xf32>
    %cst_9 = arith.constant dense<0xFF800000> : vector<1x8xf32>
    %25 = vector.multi_reduction <maximumf>, %24, %cst_9 [2] : vector<1x8x8xf32> to vector<1x8xf32>
    %26 = vector.shape_cast %25 : vector<1x8xf32> to vector<1x8x1xf32>
    %27 = vector.broadcast %26 : vector<1x8x1xf32> to vector<1x8x8xf32>
    %28 = arith.subf %24, %27 : vector<1x8x8xf32>
    %29 = math.exp %28 : vector<1x8x8xf32>
    %cst_10 = arith.constant dense<0.000000e+00> : vector<1x8xf32>
    %30 = vector.multi_reduction <add>, %29, %cst_10 [2] : vector<1x8x8xf32> to vector<1x8xf32>
    %31 = vector.shape_cast %30 : vector<1x8xf32> to vector<1x8x1xf32>
    %32 = tpu.reciprocal %31 {approx = true} : vector<1x8x1xf32> -> vector<1x8x1xf32>
    %33 = arith.mulf %31, %32 : vector<1x8x1xf32>
    %cst_11 = arith.constant 2.000000e+00 : f32
    %34 = vector.broadcast %cst_11 : f32 to vector<1x8x1xf32>
    %35 = arith.subf %34, %33 : vector<1x8x1xf32>
    %36 = arith.mulf %32, %35 : vector<1x8x1xf32>
    %37 = vector.broadcast %36 : vector<1x8x1xf32> to vector<1x8x8xf32>
    %38 = arith.mulf %29, %37 : vector<1x8x8xf32>
    %39 = arith.truncf %38 : vector<1x8x8xf32> to vector<1x8x8xbf16>
    "tpu.trace_start"() <{level = 10 : i32, message = "bqk,bkd->bqd"}> : () -> ()
    %cst_12 = arith.constant dense<0.000000e+00> : vector<1x8x128xf32>
    %40 = tpu.matmul %39, %14, %cst_12 {dimension_numbers = #tpu.dot_dimension_numbers<[2], [1], [1], [2], [0, 0, 0, 1, 1, 2], [0], [0]>} : vector<1x8x8xbf16>, vector<1x8x128xbf16>, vector<1x8x128xf32> -> vector<1x8x128xf32>
    "tpu.trace_stop"() : () -> ()
    %41 = vector.extract_strided_slice %40 {offsets = [0, 0, 0], sizes = [1, 8, 16], strides = [1, 1, 1]} : vector<1x8x128xf32> to vector<1x8x16xf32>
    %c0_13 = arith.constant 0 : index
    %c0_14 = arith.constant 0 : index
    %c0_15 = arith.constant 0 : index
    %42 = vector.load %arg4[%c0_13, %c0_14, %c0_15] : memref<1x8x16xf32, #tpu.memory_space<vmem>>, vector<1x8x16xf32>
    tpu.vector_store %arg4[%c0_13, %c0_14, %c0_15], %41 {strides = array<i32>} : memref<1x8x16xf32, #tpu.memory_space<vmem>>, vector<1x8x16xf32>,
    return
  }
  func.func @transform_0(%arg0: i32) -> (i32, i32, i32) {
    %c0_i32 = arith.constant 0 : i32
    %c0_i32_0 = arith.constant 0 : i32
    %c0_i32_1 = arith.constant 0 : i32
    return %arg0, %c0_i32, %c0_i32_0 : i32, i32, i32
  }
  func.func @transform_1(%arg0: i32) -> (i32, i32) {
    %c0_i32 = arith.constant 0 : i32
    %c0_i32_0 = arith.constant 0 : i32
    %c0_i32_1 = arith.constant 0 : i32
    return %c0_i32, %c0_i32_0 : i32, i32
  }
  func.func @transform_2(%arg0: i32) -> (i32, i32) {
    %c0_i32 = arith.constant 0 : i32
    %c0_i32_0 = arith.constant 0 : i32
    %c0_i32_1 = arith.constant 0 : i32
    return %c0_i32, %c0_i32_0 : i32, i32
  }
  func.func @transform_3(%arg0: i32) -> (i32, i32, i32) {
    %c0_i32 = arith.constant 0 : i32
    %c0_i32_0 = arith.constant 0 : i32
    %c0_i32_1 = arith.constant 0 : i32
    return %arg0, %c0_i32, %c0_i32_0 : i32, i32, i32
  }
}

module attributes {stable_mosaic.version = 11 : i64} {
  func.func @_attn_kernel(%arg0: i32, %arg1: memref<1x8x32xf32, #tpu.memory_space<vmem>>, %arg2: memref<32x384xbf16, #tpu.memory_space<vmem>>, %arg3: memref<1x384xf32, #tpu.memory_space<vmem>>, %arg4: memref<1x8x16xf32, #tpu.memory_space<vmem>>) attributes {dimension_semantics = [#tpu.dimension_semantics<parallel>], iteration_bounds = array<i64: 2>, scalar_prefetch = 0 : i64, scratch_operands = 0 : i64, tpu.core_type = #tpu.core_type<tc>, window_params = [{transform_indices = @transform_0, window_bounds = array<i64: 1, 8, 32>}, {pipeline_mode = #tpu.pipeline_mode<synchronous>, transform_indices = @transform_1, window_bounds = array<i64: 32, 384>}, {pipeline_mode = #tpu.pipeline_mode<synchronous>, transform_indices = @transform_2, window_bounds = array<i64: 1, 384>}, {transform_indices = @transform_3, window_bounds = array<i64: 1, 8, 16>}]} {
    %c0 = arith.constant 0 : index
    %c0_0 = arith.constant 0 : index
    %c0_1 = arith.constant 0 : index
    %0 = vector.load %arg1[%c0, %c0_0, %c0_1] : memref<1x8x32xf32, #tpu.memory_space<vmem>>, vector<1x8x32xf32>
    %1 = arith.truncf %0 : vector<1x8x32xf32> to vector<1x8x32xbf16>
    %c0_2 = arith.constant 0 : index
    %c0_3 = arith.constant 0 : index
    %2 = vector.load %arg2[%c0_2, %c0_3] : memref<32x384xbf16, #tpu.memory_space<vmem>>, vector<32x384xbf16>
    %3 = vector.shape_cast %1 : vector<1x8x32xbf16> to vector<8x32xbf16>
    %cst = arith.constant dense<0.000000e+00> : vector<8x384xf32>
    %4 = tpu.matmul %3, %2, %cst {dimension_numbers = #tpu.dot_dimension_numbers<[1], [0], [0], [1], [0, 0, 1, 1], [], []>} : vector<8x32xbf16>, vector<32x384xbf16>, vector<8x384xf32> -> vector<8x384xf32>
    %c0_4 = arith.constant 0 : index
    %c0_5 = arith.constant 0 : index
    %5 = vector.load %arg3[%c0_4, %c0_5] : memref<1x384xf32, #tpu.memory_space<vmem>>, vector<1x384xf32>
    %6 = vector.broadcast %5 : vector<1x384xf32> to vector<8x384xf32>
    %7 = arith.addf %4, %6 : vector<8x384xf32>
    %8 = vector.shape_cast %7 : vector<8x384xf32> to vector<1x8x384xf32>
    %9 = vector.extract_strided_slice %8 {offsets = [0, 0, 0], sizes = [1, 8, 128], strides = [1, 1, 1]} : vector<1x8x384xf32> to vector<1x8x128xf32>
    %10 = arith.truncf %9 : vector<1x8x128xf32> to vector<1x8x128xbf16>
    %11 = vector.extract_strided_slice %8 {offsets = [0, 0, 128], sizes = [1, 8, 128], strides = [1, 1, 1]} : vector<1x8x384xf32> to vector<1x8x128xf32>
    %12 = arith.truncf %11 : vector<1x8x128xf32> to vector<1x8x128xbf16>
    %13 = vector.extract_strided_slice %8 {offsets = [0, 0, 256], sizes = [1, 8, 128], strides = [1, 1, 1]} : vector<1x8x384xf32> to vector<1x8x128xf32>
    %14 = arith.truncf %13 : vector<1x8x128xf32> to vector<1x8x128xbf16>
    "tpu.trace_start"() <{level = 10 : i32, message = "bqd,bkd->bqk"}> : () -> ()
    %cst_6 = arith.constant dense<0.000000e+00> : vector<1x8x8xf32>
    %15 = tpu.matmul %10, %12, %cst_6 {dimension_numbers = #tpu.dot_dimension_numbers<[2], [2], [1], [1], [0, 0, 0, 1, 1, 1], [0], [0]>} : vector<1x8x128xbf16>, vector<1x8x128xbf16>, vector<1x8x8xf32> -> vector<1x8x8xf32>
    "tpu.trace_stop"() : () -> ()
    %16 = tpu.iota {dimensions = array<i32: 0>} : vector<8x8xi32>
    %17 = tpu.iota {dimensions = array<i32: 1>} : vector<8x8xi32>
    %18 = arith.cmpi sgt, %17, %16 : vector<8x8xi32>
    %19 = vector.shape_cast %18 : vector<8x8xi1> to vector<1x8x8xi1>
    %cst_7 = arith.constant 0.000000e+00 : f32
    %20 = vector.broadcast %cst_7 : f32 to vector<1x8x8xf32>
    %21 = arith.cmpf oeq, %15, %20 : vector<1x8x8xf32>
    %22 = arith.ori %19, %21 : vector<1x8x8xi1>
    %cst_8 = arith.constant 0xFF800000 : f32
    %23 = vector.broadcast %cst_8 : f32 to vector<1x8x8xf32>
    %24 = arith.select %22, %23, %15 : vector<1x8x8xi1>, vector<1x8x8xf32>
    %cst_9 = arith.constant dense<0xFF800000> : vector<1x8xf32>
    %25 = vector.multi_reduction <maximumf>, %24, %cst_9 [2] : vector<1x8x8xf32> to vector<1x8xf32>
    %26 = vector.shape_cast %25 : vector<1x8xf32> to vector<1x8x1xf32>
    %27 = vector.broadcast %26 : vector<1x8x1xf32> to vector<1x8x8xf32>
    %28 = arith.subf %24, %27 : vector<1x8x8xf32>
    %29 = math.exp %28 : vector<1x8x8xf32>
    %cst_10 = arith.constant dense<0.000000e+00> : vector<1x8xf32>
    %30 = vector.multi_reduction <add>, %29, %cst_10 [2] : vector<1x8x8xf32> to vector<1x8xf32>
    %31 = vector.shape_cast %30 : vector<1x8xf32> to vector<1x8x1xf32>
    %32 = tpu.reciprocal %31 {approx = true} : vector<1x8x1xf32> -> vector<1x8x1xf32>
    %33 = arith.mulf %31, %32 : vector<1x8x1xf32>
    %cst_11 = arith.constant 2.000000e+00 : f32
    %34 = vector.broadcast %cst_11 : f32 to vector<1x8x1xf32>
    %35 = arith.subf %34, %33 : vector<1x8x1xf32>
    %36 = arith.mulf %32, %35 : vector<1x8x1xf32>
    %37 = vector.broadcast %36 : vector<1x8x1xf32> to vector<1x8x8xf32>
    %38 = arith.mulf %29, %37 : vector<1x8x8xf32>
    %39 = arith.truncf %38 : vector<1x8x8xf32> to vector<1x8x8xbf16>
    "tpu.trace_start"() <{level = 10 : i32, message = "bqk,bkd->bqd"}> : () -> ()
    %cst_12 = arith.constant dense<0.000000e+00> : vector<1x8x128xf32>
    %40 = tpu.matmul %39, %14, %cst_12 {dimension_numbers = #tpu.dot_dimension_numbers<[2], [1], [1], [2], [0, 0, 0, 1, 1, 2], [0], [0]>} : vector<1x8x8xbf16>, vector<1x8x128xbf16>, vector<1x8x128xf32> -> vector<1x8x128xf32>
    "tpu.trace_stop"() : () -> ()
    %41 = vector.extract_strided_slice %40 {offsets = [0, 0, 0], sizes = [1, 8, 16], strides = [1, 1, 1]} : vector<1x8x128xf32> to vector<1x8x16xf32>
    %c0_13 = arith.constant 0 : index
    %c0_14 = arith.constant 0 : index
    %c0_15 = arith.constant 0 : index
    %42 = vector.load %arg4[%c0_13, %c0_14, %c0_15] : memref<1x8x16xf32, #tpu.memory_space<vmem>>, vector<1x8x16xf32>
    tpu.vector_store %arg4[%c0_13, %c0_14, %c0_15], %41 {strides = array<i32>} : memref<1x8x16xf32, #tpu.memory_space<vmem>>, vector<1x8x16xf32>,
    return
  }
  func.func @transform_0(%arg0: i32) -> (i32, i32, i32) {
    %c0_i32 = arith.constant 0 : i32
    %c0_i32_0 = arith.constant 0 : i32
    %c0_i32_1 = arith.constant 0 : i32
    return %arg0, %c0_i32, %c0_i32_0 : i32, i32, i32
  }
  func.func @transform_1(%arg0: i32) -> (i32, i32) {
    %c0_i32 = arith.constant 0 : i32
    %c0_i32_0 = arith.constant 0 : i32
    %c0_i32_1 = arith.constant 0 : i32
    return %c0_i32, %c0_i32_0 : i32, i32
  }
  func.func @transform_2(%arg0: i32) -> (i32, i32) {
    %c0_i32 = arith.constant 0 : i32
    %c0_i32_0 = arith.constant 0 : i32
    %c0_i32_1 = arith.constant 0 : i32
    return %c0_i32, %c0_i32_0 : i32, i32
  }
  func.func @transform_3(%arg0: i32) -> (i32, i32, i32) {
    %c0_i32 = arith.constant 0 : i32
    %c0_i32_0 = arith.constant 0 : i32
    %c0_i32_1 = arith.constant 0 : i32
    return %arg0, %c0_i32, %c0_i32_0 : i32, i32, i32
  }
}

</mosaic_0001>

<llo_original>
// kernel: tpu_custom_call.1
$region0: #{tpu_custom_call.1}
  #allocation0 [shape = 'u32[]', space=smem, size = 0x4, offset = 0x4, fixed_abs, tag = 'smem constant byte address 0x4 - core index']
  #allocation1 [shape = 'u32[144,128]{1,0:T(1,128)}', space=vmem, size = 0x12000, scoped, tag = 'internal scratch']
  %s0 = inlined_call_operand.hbm [shape: f32[2,8,32], index: 0, kind: input, shape index: {}]
  %s1 = inlined_call_operand.hbm [shape: bf16[32,384], index: 1, kind: input, shape index: {}]
  %s2 = inlined_call_operand.vmem [shape: f32[1,384], index: 2, kind: input, shape index: {}]
  %s3 = inlined_call_operand.hbm [shape: f32[2,8,16], index: 3, kind: output, shape index: {}]
  %s4 = sld [smem:[#allocation0]]
  $region53: #{tpu_custom_call.1} parent=0
    _
  %s6 = ssub.s32 1, %s4
  %s7 = scalar_select 0, %s6, %s4
  $region1: #{tpu_custom_call.1} parent=0
    #allocation2 [shape = 'u8[8192]{0}', space=vmem, size = 0x2000, scoped, tag = 'input window, operand 0']
    #allocation3 [shape = 's32[2]{0}', space=sflag, size = 0x8, scoped, tag = 'scoped memory for tpu_custom_call.1']
    #allocation4 [shape = 's32[2]{0}', space=sflag, size = 0x8, scoped, tag = 'scoped memory for tpu_custom_call.1']
    #allocation5 [shape = 'u8[24576]{0}', space=vmem, size = 0x6000, scoped, tag = 'input window, operand 1, single buffered']
    #allocation6 [shape = 's32[1]{0}', space=sflag, size = 0x4, scoped, tag = 'scoped memory for tpu_custom_call.1']
    #allocation7 [shape = 'u8[8192]{0}', space=vmem, size = 0x2000, scoped, tag = 'output window, operand 0']
    %8 = vsyncpa [#allocation3], 0
    %s9 = scalar_lea.sflag [#allocation3], 1
    %10 = vsyncpa %s9, 0
    %11 = vsyncpa [#allocation6], 0
    %12 = vsyncpa [#allocation4], 0
    %s13 = scalar_lea.sflag [#allocation4], 1
    %14 = vsyncpa %s13, 0
    loop: start=0, step=1, limit=4
    $region2: #{tpu_custom_call.1} parent=1 // loop_pre_header
      _
    $region3: #{tpu_custom_call.1} parent=1 // loop_header
      %s16 = sphi 0, %s20
      %p17 = scmp.ge.s32.totalorder %s16, 4
      %s26 = sphi 0, %s28
      %s29 = sphi 0, %s26
      %s30 = sphi 0, %s29
      %s46 = sphi 0, %s30
      %s50 = sphi 0, %s50
      %s52 = sphi 0, %s50
      %s53 = sphi 0, %s52
      %s67 = sphi 0, %s53
      %s71 = sphi 0, %s71
      %s73 = sphi 0, %s71
      %s74 = sphi 0, %s73
      %s88 = sphi 0, %s74
      %s94 = sphi 0, %s96
      %s97 = sphi 0, %s94
      %s98 = sphi 0, %s97
      %s114 = sphi 0, %s98
    $region4: #{tpu_custom_call.1} parent=1 // loop_header_branch
      %19 = sbr.rel (%p17) target = $region8
    $region5: #{tpu_custom_call.1} parent=1 // loop_body
      %s21 = ssub.s32 %s16, 1
      %s22 = ssub.s32 %s16, 2
      %s23 = sadd.s32 %s16, 1
      %s24 = ssub.s32 %s16, %s23
      %p25 = scmp.eq.s32.totalorder %s24, 0
      %s27 = sadd.s32 %s26, 1
      %s28 = scalar_select %p25, %s26, %s27
      %p31 = pneg %p25
      %p32 = scmp.eq.s32.totalorder %s16, 1
      %p33 = por %p31, %p32
      %p34 = scmp.ne.s32.totalorder %s26, %s29
      %p35 = scmp.eq.s32.totalorder %s16, 0
      %p36 = por %p34, %p35
      %p37 = scmp.ne.s32.totalorder %s26, %s29
      %p38 = scmp.eq.s32.totalorder %s21, 1
      %p39 = por %p37, %p38
      %p40 = scmp.ne.s32.totalorder %s29, %s30
      %p41 = scmp.eq.s32.totalorder %s21, 0
      %p42 = por %p40, %p41
      %p43 = scmp.ne.s32.totalorder %s29, %s30
      %p44 = scmp.eq.s32.totalorder %s22, 1
      %p45 = por %p43, %p44
      %p47 = scmp.ne.s32.totalorder %s30, %s46
      %p48 = scmp.eq.s32.totalorder %s22, 0
      %p49 = por %p47, %p48
      %s51 = sadd.s32 %s50, 1
      %p54 = scmp.eq.s32.totalorder %s16, 1
      %p55 = scmp.ne.s32.totalorder %s50, %s52
      %p56 = scmp.eq.s32.totalorder %s16, 0
      %p57 = por %p55, %p56
      %p58 = scmp.ne.s32.totalorder %s50, %s52
      %p59 = scmp.eq.s32.totalorder %s21, 1
      %p60 = por %p58, %p59
      %p61 = scmp.ne.s32.totalorder %s52, %s53
      %p62 = scmp.eq.s32.totalorder %s21, 0
      %p63 = por %p61, %p62
      %p64 = scmp.ne.s32.totalorder %s52, %s53
      %p65 = scmp.eq.s32.totalorder %s22, 1
      %p66 = por %p64, %p65
      %p68 = scmp.ne.s32.totalorder %s53, %s67
      %p69 = scmp.eq.s32.totalorder %s22, 0
      %p70 = por %p68, %p69
      %s72 = sadd.s32 %s71, 1
      %p75 = scmp.eq.s32.totalorder %s16, 1
      %p76 = scmp.ne.s32.totalorder %s71, %s73
      %p77 = scmp.eq.s32.totalorder %s16, 0
      %p78 = por %p76, %p77
      %p79 = scmp.ne.s32.totalorder %s71, %s73
      %p80 = scmp.eq.s32.totalorder %s21, 1
      %p81 = por %p79, %p80
      %p82 = scmp.ne.s32.totalorder %s73, %s74
      %p83 = scmp.eq.s32.totalorder %s21, 0
      %p84 = por %p82, %p83
      %p85 = scmp.ne.s32.totalorder %s73, %s74
      %p86 = scmp.eq.s32.totalorder %s22, 1
      %p87 = por %p85, %p86
      %p89 = scmp.ne.s32.totalorder %s74, %s88
      %p90 = scmp.eq.s32.totalorder %s22, 0
      %p91 = por %p89, %p90
      %s92 = ssub.s32 %s16, %s23
      %p93 = scmp.eq.s32.totalorder %s92, 0
      %s95 = sadd.s32 %s94, 1
      %s96 = scalar_select %p93, %s94, %s95
      %p99 = pneg %p93
      %p100 = scmp.eq.s32.totalorder %s16, 1
      %p101 = por %p99, %p100
      %p102 = scmp.ne.s32.totalorder %s94, %s97
      %p103 = scmp.eq.s32.totalorder %s16, 0
      %p104 = por %p102, %p103
      %p105 = scmp.ne.s32.totalorder %s94, %s97
      %p106 = scmp.eq.s32.totalorder %s21, 1
      %p107 = por %p105, %p106
      %p108 = scmp.ne.s32.totalorder %s97, %s98
      %p109 = scmp.eq.s32.totalorder %s21, 0
      %p110 = por %p108, %p109
      %p111 = scmp.ne.s32.totalorder %s97, %s98
      %p112 = scmp.eq.s32.totalorder %s22, 1
      %p113 = por %p111, %p112
      %p115 = scmp.ne.s32.totalorder %s98, %s114
      %p116 = scmp.eq.s32.totalorder %s22, 0
      %p117 = por %p115, %p116
      %p118 = scmp.le.s32.totalorder 1, %s16
      %p119 = scmp.lt.s32.totalorder %s16, 3
      %p120 = pnand %p118, %p119
      %p121 = pneg %p120
      // Predicated region
      $region9: #{tpu_custom_call.1} parent=5 // pred_check
        _
      $region10: #{tpu_custom_call.1} parent=5 // pred_check_branch
        %123 = sbr.rel (%p120) target = $region12
      $region11: #{tpu_custom_call.1} parent=5 // pred_region
        %s124 = ssub.s32 %s16, 1
        // Predicated region
        $region13: #{tpu_custom_call.1} parent=11 // pred_check
          %p125 = pneg %p63
        $region14: #{tpu_custom_call.1} parent=11 // pred_check_branch
          %127 = sbr.rel (%p125) target = $region16
        $region15: #{tpu_custom_call.1} parent=11 // pred_region
          %s129 = ssub.s32 768, 768
          %130 = vsyncadd [#allocation6], %s129
          %s131 = sshll.u32 [#allocation5], 4
          %s132 = int_to_ptr.vmem [resolvable:$true] %s131
          %137 = dma.hbm_to_vmem [thread:$0]  %s1, 768, %s132, [#allocation6], 192, 192, 12
        $region16: #{tpu_custom_call.1} parent=11 // pred_fallthru
          _
        // Predicated region
        $region17: #{tpu_custom_call.1} parent=11 // pred_check
          %p138 = pneg %p84
        $region18: #{tpu_custom_call.1} parent=11 // pred_check_branch
          %140 = sbr.rel (%p138) target = $region20
        $region19: #{tpu_custom_call.1} parent=11 // pred_region
          _
        $region20: #{tpu_custom_call.1} parent=11 // pred_fallthru
          _
      $region12: #{tpu_custom_call.1} parent=5 // pred_fallthru
        _
      %p141 = scmp.lt.s32.totalorder %s16, 2
      // Predicated region
      $region21: #{tpu_custom_call.1} parent=5 // pred_check
        %p142 = pneg %p141
      $region22: #{tpu_custom_call.1} parent=5 // pred_check_branch
        %144 = sbr.rel (%p142) target = $region24
      $region23: #{tpu_custom_call.1} parent=5 // pred_region
        // Predicated region
        $region25: #{tpu_custom_call.1} parent=23 // pred_check
          %p145 = pneg %p36
        $region26: #{tpu_custom_call.1} parent=23 // pred_check_branch
          %147 = sbr.rel (%p145) target = $region28
        $region27: #{tpu_custom_call.1} parent=23 // pred_region
          %s148 = sand.u32 %s26, 1
          %s149 = scalar_lea.sflag [#allocation3], %s148
          %s150 = sand.u32 %s26, 1
          %s151 = smul.addr %s150, 8
          %s152 = scalar_lea.vmem [#allocation2], %s151
          %s154 = ssub.s32 128, 128
          %155 = vsyncadd %s149, %s154
          %s156 = smul.addr %s16, 128
          %s157 = scalar_lea.hbm %s0, %s156
          %s159 = sshll.u32 %s152, 4
          %s160 = int_to_ptr.vmem [resolvable:$true] %s159
          %162 = dma.hbm_to_vmem [thread:$0]  %s157, 128, %s160, %s149
        $region28: #{tpu_custom_call.1} parent=23 // pred_fallthru
          _
      $region24: #{tpu_custom_call.1} parent=5 // pred_fallthru
        _
      %p163 = scmp.le.s32.totalorder 1, %s16
      %p164 = scmp.lt.s32.totalorder %s16, 3
      %p165 = pnand %p163, %p164
      %p166 = pneg %p165
      // Predicated region
      $region29: #{tpu_custom_call.1} parent=5 // pred_check
        _
      $region30: #{tpu_custom_call.1} parent=5 // pred_check_branch
        %168 = sbr.rel (%p165) target = $region32
      $region31: #{tpu_custom_call.1} parent=5 // pred_region
        %s169 = ssub.s32 %s16, 1
        %s170 = sand.u32 %s29, 1
        %s171 = scalar_lea.sflag [#allocation3], %s170
        %s172 = sand.u32 %s29, 1
        %s173 = smul.addr %s172, 8
        %s174 = scalar_lea.vmem [#allocation2], %s173
        // Predicated region
        $region33: #{tpu_custom_call.1} parent=31 // pred_check
          %p175 = pneg %p42
        $region34: #{tpu_custom_call.1} parent=31 // pred_check_branch
          %177 = sbr.rel (%p175) target = $region36
        $region35: #{tpu_custom_call.1} parent=31 // pred_region
          %178 = dma.done %s171, 128
        $region36: #{tpu_custom_call.1} parent=31 // pred_fallthru
          _
        // Predicated region
        $region37: #{tpu_custom_call.1} parent=31 // pred_check
          %p179 = pneg %p63
        $region38: #{tpu_custom_call.1} parent=31 // pred_check_branch
          %181 = sbr.rel (%p179) target = $region40
        $region39: #{tpu_custom_call.1} parent=31 // pred_region
          %182 = dma.done [#allocation6], 768
        $region40: #{tpu_custom_call.1} parent=31 // pred_fallthru
          _
        %s183 = sand.u32 %s29, 1
        %s184 = scalar_lea.sflag [#allocation3], %s183
        %s185 = sand.u32 %s29, 1
        %s186 = smul.addr %s185, 8
        %s187 = scalar_lea.vmem [#allocation2], %s186
        %p188 = pneg %p42
        %p189 = pneg %p39
        %p190 = pneg %p63
        %p191 = pneg %p60
        %p192 = pneg %p84
        %p193 = pneg %p81
        %p194 = pneg %p110
        %p195 = pneg %p107
        %s196 = sand.u32 %s97, 1
        %s197 = scalar_lea.sflag [#allocation4], %s196
        %s198 = sand.u32 %s97, 1
        %s199 = smul.addr %s198, 8
        %s200 = scalar_lea.vmem [#allocation7], %s199
        %v202 = vld [vmem:[%s174] sm:$0xff]
        %v203 = vpack.c.bf16 %v202, %v202
        %v204 = vld [vmem:[#allocation5] sm:$0xff]
        %v205 = vld [vmem:[#allocation5 + $0x8] sm:$0xf]
        %v206 = vld [vmem:[#allocation5 + $0xc] sm:$0xff]
        %v207 = vld [vmem:[#allocation5 + $0x14] sm:$0xf]
        %v208 = vld [vmem:[#allocation5 + $0x18] sm:$0xff]
        %v209 = vld [vmem:[#allocation5 + $0x20] sm:$0xf]
        %v210 = vld [vmem:[#allocation5 + $0x24] sm:$0xff]
        %v211 = vld [vmem:[#allocation5 + $0x2c] sm:$0xf]
        %v212 = vld [vmem:[%s2] sm:$0x7]
        %v214 = vlaneseq
        %v215 = vshrl.u32 %v214, 7
        %v216 = vsub.s32 0, %v215
        %v217 = vrot.slane %v212, %v216
        %v218 = vlaneseq
        %v219 = vshrl.u32 %v218, 7
        %v220 = vsub.s32 1, %v219
        %v221 = vrot.slane %v212, %v220
        %v222 = vlaneseq
        %v223 = vshrl.u32 %v222, 7
        %v224 = vsub.s32 2, %v223
        %v225 = vrot.slane %v212, %v224
        %v237 = vunpack.c.l.b16 %v204
        %v238 = vunpack.c.h.b16 %v204
        %v239 = vunpack.c.l.b16 %v205
        %v240 = vunpack.c.l.b16 %v206
        %v241 = vunpack.c.h.b16 %v206
        %v242 = vunpack.c.l.b16 %v207
        %v243 = vunpack.c.l.b16 %v208
        %v244 = vunpack.c.h.b16 %v208
        %v245 = vunpack.c.l.b16 %v209
        %v246 = vunpack.c.l.b16 %v210
        %v247 = vunpack.c.h.b16 %v210
        %v248 = vunpack.c.l.b16 %v211
        %v249 = vpack.c.b16 %v240, %v237
        %v250 = vpack.c.b16 %v241, %v238
        %v251 = vpack.c.b16 %v242, %v239
        %v252 = vpack.c.b16 %v246, %v243
        %v253 = vpack.c.b16 %v247, %v244
        %v254 = vpack.c.b16 %v248, %v245
        %vm261 = vcmask 261120
        %v263 = vsel %vm261, %v203, 0
        %265 = vmatprep.subr.bf16.mxu0 0
        %266 = vmatpush1.bf16.msra.mxu0 0
        %267 = vmatprep.subr.bf16.mxu0 0
        %268 = vmatpush1.bf16.msra.mxu0 0
        %269 = vmatprep.subr.bf16.mxu0 0
        %270 = vmatpush1.bf16.msra.mxu0 0
        %271 = vmatprep.subr.bf16.mxu0 0
        %272 = vmatpush1.bf16.msra.mxu0 0
        %273 = vmatprep.subr.bf16.mxu0 0
        %274 = vmatpush1.bf16.msra.mxu0 0
        %275 = vmatprep.subr.bf16.mxu0 0
        %276 = vmatpush1.bf16.msra.mxu0 0
        %277 = vmatprep.subr.bf16.mxu0 %v253
        %278 = vmatpush1.bf16.msra.mxu0 %v252
        %279 = vmatprep.subr.bf16.mxu0 %v250
        %280 = vmatpush1.bf16.msra.mxu0 %v249
        %281 = vmatprep.subr.bf16.mxu0 0
        %282 = vmatpush2.bf16.msra.mxu0 0
        %283 = vmatprep.subr.bf16.mxu0 0
        %284 = vmatpush2.bf16.msra.mxu0 0
        %285 = vmatprep.subr.bf16.mxu0 0
        %286 = vmatpush2.bf16.msra.mxu0 0
        %287 = vmatprep.subr.bf16.mxu0 0
        %288 = vmatpush2.bf16.msra.mxu0 0
        %289 = vmatprep.subr.bf16.mxu0 0
        %290 = vmatpush2.bf16.msra.mxu0 0
        %291 = vmatprep.subr.bf16.mxu0 0
        %292 = vmatpush2.bf16.msra.mxu0 0
        %293 = vmatprep.subr.bf16.mxu0 0
        %294 = vmatpush2.bf16.msra.mxu0 0
        %295 = vmatprep.subr.bf16.mxu0 0
        %296 = vmatpush2.bf16.msra.mxu0 0
        %297 = vmatprep.mubr.bf16.mxu0 0
        %298 = vmatmul.mubr.bf16.gmra.mxu0 %v263
        %v299 = vpop.f32.mrf.mxu0
        %v300 = vadd.f32 %v217, %v299
        %v301 = vpop.f32.mrf.mxu0
        %v302 = vadd.f32 %v221, %v301
        %v303 = vpop.f32.mrf.mxu0
        %v304 = vpop.f32.mrf.mxu0
        %305 = vdwg.mxu0
        %306 = vmatprep.subr.bf16.mxu0 0
        %307 = vmatpush1.bf16.msra.mxu0 0
        %308 = vmatprep.subr.bf16.mxu0 0
        %309 = vmatpush1.bf16.msra.mxu0 0
        %310 = vmatprep.subr.bf16.mxu0 0
        %311 = vmatpush1.bf16.msra.mxu0 0
        %312 = vmatprep.subr.bf16.mxu0 0
        %313 = vmatpush1.bf16.msra.mxu0 0
        %314 = vmatprep.subr.bf16.mxu0 0
        %315 = vmatpush1.bf16.msra.mxu0 0
        %316 = vmatprep.subr.bf16.mxu0 0
        %317 = vmatpush1.bf16.msra.mxu0 0
        %318 = vmatprep.subr.bf16.mxu0 0
        %319 = vmatpush1.bf16.msra.mxu0 %v254
        %320 = vmatprep.subr.bf16.mxu0 0
        %321 = vmatpush1.bf16.msra.mxu0 %v251
        %322 = vmatprep.subr.bf16.mxu0 0
        %323 = vmatpush2.bf16.msra.mxu0 0
        %324 = vmatprep.subr.bf16.mxu0 0
        %325 = vmatpush2.bf16.msra.mxu0 0
        %326 = vmatprep.subr.bf16.mxu0 0
        %327 = vmatpush2.bf16.msra.mxu0 0
        %328 = vmatprep.subr.bf16.mxu0 0
        %329 = vmatpush2.bf16.msra.mxu0 0
        %330 = vmatprep.subr.bf16.mxu0 0
        %331 = vmatpush2.bf16.msra.mxu0 0
        %332 = vmatprep.subr.bf16.mxu0 0
        %333 = vmatpush2.bf16.msra.mxu0 0
        %334 = vmatprep.subr.bf16.mxu0 0
        %335 = vmatpush2.bf16.msra.mxu0 0
        %336 = vmatprep.subr.bf16.mxu0 0
        %337 = vmatpush2.bf16.msra.mxu0 0
        %338 = vmatprep.mubr.bf16.mxu0 0
        %339 = vmatmul.mubr.bf16.gmra.mxu0 %v263
        %v340 = vpop.f32.mrf.mxu0
        %v341 = vadd.f32 %v225, %v340
        %v342 = vpop.f32.mrf.mxu0
        %v343 = vpop.f32.mrf.mxu0
        %v344 = vpop.f32.mrf.mxu0
        %345 = vdwg.mxu0
        %v346 = vpack.c.bf16 %v300, %v300
        %v347 = vpack.c.bf16 %v302, %v302
        %v348 = vpack.c.bf16 %v341, %v341
        %349 = vmatprep.subr.bf16.mxu0 0
        %350 = vmatpush1.bf16.xpose.msra.mxu0 0
        %351 = vmatprep.subr.bf16.mxu0 0
        %352 = vmatpush1.bf16.xpose.msra.mxu0 0
        %353 = vmatprep.subr.bf16.mxu0 0
        %354 = vmatpush1.bf16.xpose.msra.mxu0 0
        %355 = vmatprep.subr.bf16.mxu0 0
        %356 = vmatpush1.bf16.xpose.msra.mxu0 0
        %357 = vmatprep.subr.bf16.mxu0 0
        %358 = vmatpush1.bf16.xpose.msra.mxu0 0
        %359 = vmatprep.subr.bf16.mxu0 0
        %360 = vmatpush1.bf16.xpose.msra.mxu0 0
        %361 = vmatprep.subr.bf16.mxu0 0
        %362 = vmatpush1.bf16.xpose.msra.mxu0 0
        %363 = vmatprep.subr.bf16.mxu0 0
        %364 = vmatpush1.bf16.xpose.msra.mxu0 %v347
        %365 = vmatprep.subr.bf16.mxu0 0
        %366 = vmatpush2.bf16.xpose.msra.mxu0 0
        %367 = vmatprep.subr.bf16.mxu0 0
        %368 = vmatpush2.bf16.xpose.msra.mxu0 0
        %369 = vmatprep.subr.bf16.mxu0 0
        %370 = vmatpush2.bf16.xpose.msra.mxu0 0
        %371 = vmatprep.subr.bf16.mxu0 0
        %372 = vmatpush2.bf16.xpose.msra.mxu0 0
        %373 = vmatprep.subr.bf16.mxu0 0
        %374 = vmatpush2.bf16.xpose.msra.mxu0 0
        %375 = vmatprep.subr.bf16.mxu0 0
        %376 = vmatpush2.bf16.xpose.msra.mxu0 0
        %377 = vmatprep.subr.bf16.mxu0 0
        %378 = vmatpush2.bf16.xpose.msra.mxu0 0
        %379 = vmatprep.subr.bf16.mxu0 0
        %380 = vmatpush2.bf16.xpose.msra.mxu0 0
        %381 = vmatprep.mubr.bf16.mxu0 0
        %382 = vmatmul.mubr.bf16.gmra.mxu0 %v346
        %v383 = vpop.f32.mrf.mxu0
        %v384 = vadd.f32 0.0, %v383
        %v385 = vpop.f32.mrf.mxu0
        %v386 = vpop.f32.mrf.mxu0
        %v387 = vpop.f32.mrf.mxu0
        %388 = vdwg.mxu0
        %v389 = vlaneseq
        %v390 = vshrl.u32 %v389, 7
        %v391 = vlaneseq
        %v392 = vand.u32 %v391, 127
        %vm393 = vcmp.gt.s32.totalorder %v392, %v390
        %vm394 = vcmp.eq.f32.partialorder %v384, 0.0
        %vm395 = vmor %vm393, %vm394
        %v396 = vsel %vm395, -inf, %v384
        %vm397 = vcmask 64512
        %v398 = vsel %vm397, %v396, -inf
        %399 = vmax.xlane.f32.xlu0 %v398
        %v400 = vpop.xlane.xlu0 %399
        %v401 = vsub.f32 %v396, %v400
        %v402 = vmul.f32 %v401, 1.442695
        %v403 = vpow.pop %v402
        %v404 = vsel %vm397, %v403, 0.0
        %405 = vadd.xlane.f32.xlu0 %v404
        %v406 = vpop.xlane.xlu0 %405
        %v407 = vrcp.pop %v406
        %v408 = vmul.f32 %v406, %v407
        %v409 = vsub.f32 2.0, %v408
        %v410 = vmul.f32 %v407, %v409
        %v411 = vmul.f32 %v403, %v410
        %v412 = vpack.c.bf16 %v411, %v411
        %v414 = vsel %vm397, %v412, 0
        %vm416 = vcmask 1043456
        %v418 = vsel %vm416, %v348, 0
        %420 = vmatprep.subr.bf16.mxu0 0
        %421 = vmatpush1.bf16.msra.mxu0 0
        %422 = vmatprep.subr.bf16.mxu0 0
        %423 = vmatpush1.bf16.msra.mxu0 0
        %424 = vmatprep.subr.bf16.mxu0 0
        %425 = vmatpush1.bf16.msra.mxu0 0
        %426 = vmatprep.subr.bf16.mxu0 0
        %427 = vmatpush1.bf16.msra.mxu0 0
        %428 = vmatprep.subr.bf16.mxu0 0
        %429 = vmatpush1.bf16.msra.mxu0 0
        %430 = vmatprep.subr.bf16.mxu0 0
        %431 = vmatpush1.bf16.msra.mxu0 0
        %432 = vmatprep.subr.bf16.mxu0 0
        %433 = vmatpush1.bf16.msra.mxu0 0
        %434 = vmatprep.subr.bf16.mxu0 0
        %435 = vmatpush1.bf16.msra.mxu0 %v418
        %436 = vmatprep.subr.bf16.mxu0 0
        %437 = vmatpush2.bf16.msra.mxu0 0
        %438 = vmatprep.subr.bf16.mxu0 0
        %439 = vmatpush2.bf16.msra.mxu0 0
        %440 = vmatprep.subr.bf16.mxu0 0
        %441 = vmatpush2.bf16.msra.mxu0 0
        %442 = vmatprep.subr.bf16.mxu0 0
        %443 = vmatpush2.bf16.msra.mxu0 0
        %444 = vmatprep.subr.bf16.mxu0 0
        %445 = vmatpush2.bf16.msra.mxu0 0
        %446 = vmatprep.subr.bf16.mxu0 0
        %447 = vmatpush2.bf16.msra.mxu0 0
        %448 = vmatprep.subr.bf16.mxu0 0
        %449 = vmatpush2.bf16.msra.mxu0 0
        %450 = vmatprep.subr.bf16.mxu0 0
        %451 = vmatpush2.bf16.msra.mxu0 0
        %452 = vmatprep.mubr.bf16.mxu0 0
        %453 = vmatmul.mubr.bf16.gmra.mxu0 %v414
        %v454 = vpop.f32.mrf.mxu0
        %v455 = vadd.f32 0.0, %v454
        %v456 = vpop.f32.mrf.mxu0
        %v457 = vpop.f32.mrf.mxu0
        %v458 = vpop.f32.mrf.mxu0
        %459 = vdwg.mxu0
        %vm460 = vcmask 130048
        %461 = vst.msk [vmem:[%s200] sm:$0xff] %vm460, %v455
        %s462 = sand.u32 %s97, 1
        %s463 = scalar_lea.sflag [#allocation4], %s462
        %s464 = sand.u32 %s97, 1
        %s465 = smul.addr %s464, 8
        %s466 = scalar_lea.vmem [#allocation7], %s465
        // Predicated region
        $region41: #{tpu_custom_call.1} parent=31 // pred_check
          %p467 = pneg %p107
        $region42: #{tpu_custom_call.1} parent=31 // pred_check_branch
          %469 = sbr.rel (%p467) target = $region44
        $region43: #{tpu_custom_call.1} parent=31 // pred_region
          %s471 = ssub.s32 128, 128
          %472 = vsyncadd %s463, %s471
          %s473 = smul.addr %s21, 128
          %s474 = scalar_lea.hbm %s3, %s473
          %s476 = sshll.u32 %s466, 4
          %s477 = int_to_ptr.vmem [resolvable:$true] %s476
          %479 = dma.vmem_to_hbm [thread:$0]  %s477, 128, %s474, %s463
        $region44: #{tpu_custom_call.1} parent=31 // pred_fallthru
          _
      $region32: #{tpu_custom_call.1} parent=5 // pred_fallthru
        _
      %p480 = scmp.le.s32.totalorder 2, %s16
      // Predicated region
      $region45: #{tpu_custom_call.1} parent=5 // pred_check
        %p481 = pneg %p480
      $region46: #{tpu_custom_call.1} parent=5 // pred_check_branch
        %483 = sbr.rel (%p481) target = $region48
      $region47: #{tpu_custom_call.1} parent=5 // pred_region
        %s484 = ssub.s32 %s16, 2
        // Predicated region
        $region49: #{tpu_custom_call.1} parent=47 // pred_check
          %p485 = pneg %p113
        $region50: #{tpu_custom_call.1} parent=47 // pred_check_branch
          %487 = sbr.rel (%p485) target = $region52
        $region51: #{tpu_custom_call.1} parent=47 // pred_region
          %s488 = sand.u32 %s98, 1
          %s489 = scalar_lea.sflag [#allocation4], %s488
          %s490 = sand.u32 %s98, 1
          %s491 = smul.addr %s490, 8
          %s492 = scalar_lea.vmem [#allocation7], %s491
          %493 = dma.done %s489, 128
        $region52: #{tpu_custom_call.1} parent=47 // pred_fallthru
          _
      $region48: #{tpu_custom_call.1} parent=5 // pred_fallthru
        _
    $region6: #{tpu_custom_call.1} parent=1 // loop_footer
      %s20 = sadd.s32 1, %s16
    $region7: #{tpu_custom_call.1} parent=1 // loop_footer_branch
      %15 = sbr.rel target = $region3
    $region8: #{tpu_custom_call.1} parent=1 // loop_exit
      _
    %494 = vsyncpa [#allocation3], 1
    %s495 = scalar_lea.sflag [#allocation3], 1
    %496 = vsyncpa %s495, 1
    %497 = vsyncpa [#allocation6], 1
    %498 = vsyncpa [#allocation4], 1
    %s499 = scalar_lea.sflag [#allocation4], 1
    %500 = vsyncpa %s499, 1

// kernel: tpu_custom_call.1
$region0: #{tpu_custom_call.1}
  #allocation0 [shape = 'u32[]', space=smem, size = 0x4, offset = 0x4, fixed_abs, tag = 'smem constant byte address 0x4 - core index']
  #allocation1 [shape = 'u32[144,128]{1,0:T(1,128)}', space=vmem, size = 0x12000, scoped, tag = 'internal scratch']
  %s0 = inlined_call_operand.hbm [shape: f32[2,8,32], index: 0, kind: input, shape index: {}]
  %s1 = inlined_call_operand.hbm [shape: bf16[32,384], index: 1, kind: input, shape index: {}]
  %s2 = inlined_call_operand.vmem [shape: f32[1,384], index: 2, kind: input, shape index: {}]
  %s3 = inlined_call_operand.hbm [shape: f32[2,8,16], index: 3, kind: output, shape index: {}]
  %s4 = sld [smem:[#allocation0]]
  $region53: #{tpu_custom_call.1} parent=0
    _
  %s6 = ssub.s32 1, %s4
  %s7 = scalar_select 0, %s6, %s4
  $region1: #{tpu_custom_call.1} parent=0
    #allocation2 [shape = 'u8[8192]{0}', space=vmem, size = 0x2000, scoped, tag = 'input window, operand 0']
    #allocation3 [shape = 's32[2]{0}', space=sflag, size = 0x8, scoped, tag = 'scoped memory for tpu_custom_call.1']
    #allocation4 [shape = 's32[2]{0}', space=sflag, size = 0x8, scoped, tag = 'scoped memory for tpu_custom_call.1']
    #allocation5 [shape = 'u8[24576]{0}', space=vmem, size = 0x6000, scoped, tag = 'input window, operand 1, single buffered']
    #allocation6 [shape = 's32[1]{0}', space=sflag, size = 0x4, scoped, tag = 'scoped memory for tpu_custom_call.1']
    #allocation7 [shape = 'u8[8192]{0}', space=vmem, size = 0x2000, scoped, tag = 'output window, operand 0']
    %8 = vsyncpa [#allocation3], 0
    %s9 = scalar_lea.sflag [#allocation3], 1
    %10 = vsyncpa %s9, 0
    %11 = vsyncpa [#allocation6], 0
    %12 = vsyncpa [#allocation4], 0
    %s13 = scalar_lea.sflag [#allocation4], 1
    %14 = vsyncpa %s13, 0
    loop: start=0, step=1, limit=4
    $region2: #{tpu_custom_call.1} parent=1 // loop_pre_header
      _
    $region3: #{tpu_custom_call.1} parent=1 // loop_header
      %s16 = sphi 0, %s20
      %p17 = scmp.ge.s32.totalorder %s16, 4
      %s26 = sphi 0, %s28
      %s29 = sphi 0, %s26
      %s30 = sphi 0, %s29
      %s46 = sphi 0, %s30
      %s50 = sphi 0, %s50
      %s52 = sphi 0, %s50
      %s53 = sphi 0, %s52
      %s67 = sphi 0, %s53
      %s71 = sphi 0, %s71
      %s73 = sphi 0, %s71
      %s74 = sphi 0, %s73
      %s88 = sphi 0, %s74
      %s94 = sphi 0, %s96
      %s97 = sphi 0, %s94
      %s98 = sphi 0, %s97
      %s114 = sphi 0, %s98
    $region4: #{tpu_custom_call.1} parent=1 // loop_header_branch
      %19 = sbr.rel (%p17) target = $region8
    $region5: #{tpu_custom_call.1} parent=1 // loop_body
      %s21 = ssub.s32 %s16, 1
      %s22 = ssub.s32 %s16, 2
      %s23 = sadd.s32 %s16, 1
      %s24 = ssub.s32 %s16, %s23
      %p25 = scmp.eq.s32.totalorder %s24, 0
      %s27 = sadd.s32 %s26, 1
      %s28 = scalar_select %p25, %s26, %s27
      %p31 = pneg %p25
      %p32 = scmp.eq.s32.totalorder %s16, 1
      %p33 = por %p31, %p32
      %p34 = scmp.ne.s32.totalorder %s26, %s29
      %p35 = scmp.eq.s32.totalorder %s16, 0
      %p36 = por %p34, %p35
      %p37 = scmp.ne.s32.totalorder %s26, %s29
      %p38 = scmp.eq.s32.totalorder %s21, 1
      %p39 = por %p37, %p38
      %p40 = scmp.ne.s32.totalorder %s29, %s30
      %p41 = scmp.eq.s32.totalorder %s21, 0
      %p42 = por %p40, %p41
      %p43 = scmp.ne.s32.totalorder %s29, %s30
      %p44 = scmp.eq.s32.totalorder %s22, 1
      %p45 = por %p43, %p44
      %p47 = scmp.ne.s32.totalorder %s30, %s46
      %p48 = scmp.eq.s32.totalorder %s22, 0
      %p49 = por %p47, %p48
      %s51 = sadd.s32 %s50, 1
      %p54 = scmp.eq.s32.totalorder %s16, 1
      %p55 = scmp.ne.s32.totalorder %s50, %s52
      %p56 = scmp.eq.s32.totalorder %s16, 0
      %p57 = por %p55, %p56
      %p58 = scmp.ne.s32.totalorder %s50, %s52
      %p59 = scmp.eq.s32.totalorder %s21, 1
      %p60 = por %p58, %p59
      %p61 = scmp.ne.s32.totalorder %s52, %s53
      %p62 = scmp.eq.s32.totalorder %s21, 0
      %p63 = por %p61, %p62
      %p64 = scmp.ne.s32.totalorder %s52, %s53
      %p65 = scmp.eq.s32.totalorder %s22, 1
      %p66 = por %p64, %p65
      %p68 = scmp.ne.s32.totalorder %s53, %s67
      %p69 = scmp.eq.s32.totalorder %s22, 0
      %p70 = por %p68, %p69
      %s72 = sadd.s32 %s71, 1
      %p75 = scmp.eq.s32.totalorder %s16, 1
      %p76 = scmp.ne.s32.totalorder %s71, %s73
      %p77 = scmp.eq.s32.totalorder %s16, 0
      %p78 = por %p76, %p77
      %p79 = scmp.ne.s32.totalorder %s71, %s73
      %p80 = scmp.eq.s32.totalorder %s21, 1
      %p81 = por %p79, %p80
      %p82 = scmp.ne.s32.totalorder %s73, %s74
      %p83 = scmp.eq.s32.totalorder %s21, 0
      %p84 = por %p82, %p83
      %p85 = scmp.ne.s32.totalorder %s73, %s74
      %p86 = scmp.eq.s32.totalorder %s22, 1
      %p87 = por %p85, %p86
      %p89 = scmp.ne.s32.totalorder %s74, %s88
      %p90 = scmp.eq.s32.totalorder %s22, 0
      %p91 = por %p89, %p90
      %s92 = ssub.s32 %s16, %s23
      %p93 = scmp.eq.s32.totalorder %s92, 0
      %s95 = sadd.s32 %s94, 1
      %s96 = scalar_select %p93, %s94, %s95
      %p99 = pneg %p93
      %p100 = scmp.eq.s32.totalorder %s16, 1
      %p101 = por %p99, %p100
      %p102 = scmp.ne.s32.totalorder %s94, %s97
      %p103 = scmp.eq.s32.totalorder %s16, 0
      %p104 = por %p102, %p103
      %p105 = scmp.ne.s32.totalorder %s94, %s97
      %p106 = scmp.eq.s32.totalorder %s21, 1
      %p107 = por %p105, %p106
      %p108 = scmp.ne.s32.totalorder %s97, %s98
      %p109 = scmp.eq.s32.totalorder %s21, 0
      %p110 = por %p108, %p109
      %p111 = scmp.ne.s32.totalorder %s97, %s98
      %p112 = scmp.eq.s32.totalorder %s22, 1
      %p113 = por %p111, %p112
      %p115 = scmp.ne.s32.totalorder %s98, %s114
      %p116 = scmp.eq.s32.totalorder %s22, 0
      %p117 = por %p115, %p116
      %p118 = scmp.le.s32.totalorder 1, %s16
      %p119 = scmp.lt.s32.totalorder %s16, 3
      %p120 = pnand %p118, %p119
      %p121 = pneg %p120
      // Predicated region
      $region9: #{tpu_custom_call.1} parent=5 // pred_check
        _
      $region10: #{tpu_custom_call.1} parent=5 // pred_check_branch
        %123 = sbr.rel (%p120) target = $region12
      $region11: #{tpu_custom_call.1} parent=5 // pred_region
        %s124 = ssub.s32 %s16, 1
        // Predicated region
        $region13: #{tpu_custom_call.1} parent=11 // pred_check
          %p125 = pneg %p63
        $region14: #{tpu_custom_call.1} parent=11 // pred_check_branch
          %127 = sbr.rel (%p125) target = $region16
        $region15: #{tpu_custom_call.1} parent=11 // pred_region
          %s129 = ssub.s32 768, 768
          %130 = vsyncadd [#allocation6], %s129
          %s131 = sshll.u32 [#allocation5], 4
          %s132 = int_to_ptr.vmem [resolvable:$true] %s131
          %137 = dma.hbm_to_vmem [thread:$0]  %s1, 768, %s132, [#allocation6], 192, 192, 12
        $region16: #{tpu_custom_call.1} parent=11 // pred_fallthru
          _
        // Predicated region
        $region17: #{tpu_custom_call.1} parent=11 // pred_check
          %p138 = pneg %p84
        $region18: #{tpu_custom_call.1} parent=11 // pred_check_branch
          %140 = sbr.rel (%p138) target = $region20
        $region19: #{tpu_custom_call.1} parent=11 // pred_region
          _
        $region20: #{tpu_custom_call.1} parent=11 // pred_fallthru
          _
      $region12: #{tpu_custom_call.1} parent=5 // pred_fallthru
        _
      %p141 = scmp.lt.s32.totalorder %s16, 2
      // Predicated region
      $region21: #{tpu_custom_call.1} parent=5 // pred_check
        %p142 = pneg %p141
      $region22: #{tpu_custom_call.1} parent=5 // pred_check_branch
        %144 = sbr.rel (%p142) target = $region24
      $region23: #{tpu_custom_call.1} parent=5 // pred_region
        // Predicated region
        $region25: #{tpu_custom_call.1} parent=23 // pred_check
          %p145 = pneg %p36
        $region26: #{tpu_custom_call.1} parent=23 // pred_check_branch
          %147 = sbr.rel (%p145) target = $region28
        $region27: #{tpu_custom_call.1} parent=23 // pred_region
          %s148 = sand.u32 %s26, 1
          %s149 = scalar_lea.sflag [#allocation3], %s148
          %s150 = sand.u32 %s26, 1
          %s151 = smul.addr %s150, 8
          %s152 = scalar_lea.vmem [#allocation2], %s151
          %s154 = ssub.s32 128, 128
          %155 = vsyncadd %s149, %s154
          %s156 = smul.addr %s16, 128
          %s157 = scalar_lea.hbm %s0, %s156
          %s159 = sshll.u32 %s152, 4
          %s160 = int_to_ptr.vmem [resolvable:$true] %s159
          %162 = dma.hbm_to_vmem [thread:$0]  %s157, 128, %s160, %s149
        $region28: #{tpu_custom_call.1} parent=23 // pred_fallthru
          _
      $region24: #{tpu_custom_call.1} parent=5 // pred_fallthru
        _
      %p163 = scmp.le.s32.totalorder 1, %s16
      %p164 = scmp.lt.s32.totalorder %s16, 3
      %p165 = pnand %p163, %p164
      %p166 = pneg %p165
      // Predicated region
      $region29: #{tpu_custom_call.1} parent=5 // pred_check
        _
      $region30: #{tpu_custom_call.1} parent=5 // pred_check_branch
        %168 = sbr.rel (%p165) target = $region32
      $region31: #{tpu_custom_call.1} parent=5 // pred_region
        %s169 = ssub.s32 %s16, 1
        %s170 = sand.u32 %s29, 1
        %s171 = scalar_lea.sflag [#allocation3], %s170
        %s172 = sand.u32 %s29, 1
        %s173 = smul.addr %s172, 8
        %s174 = scalar_lea.vmem [#allocation2], %s173
        // Predicated region
        $region33: #{tpu_custom_call.1} parent=31 // pred_check
          %p175 = pneg %p42
        $region34: #{tpu_custom_call.1} parent=31 // pred_check_branch
          %177 = sbr.rel (%p175) target = $region36
        $region35: #{tpu_custom_call.1} parent=31 // pred_region
          %178 = dma.done %s171, 128
        $region36: #{tpu_custom_call.1} parent=31 // pred_fallthru
          _
        // Predicated region
        $region37: #{tpu_custom_call.1} parent=31 // pred_check
          %p179 = pneg %p63
        $region38: #{tpu_custom_call.1} parent=31 // pred_check_branch
          %181 = sbr.rel (%p179) target = $region40
        $region39: #{tpu_custom_call.1} parent=31 // pred_region
          %182 = dma.done [#allocation6], 768
        $region40: #{tpu_custom_call.1} parent=31 // pred_fallthru
          _
        %s183 = sand.u32 %s29, 1
        %s184 = scalar_lea.sflag [#allocation3], %s183
        %s185 = sand.u32 %s29, 1
        %s186 = smul.addr %s185, 8
        %s187 = scalar_lea.vmem [#allocation2], %s186
        %p188 = pneg %p42
        %p189 = pneg %p39
        %p190 = pneg %p63
        %p191 = pneg %p60
        %p192 = pneg %p84
        %p193 = pneg %p81
        %p194 = pneg %p110
        %p195 = pneg %p107
        %s196 = sand.u32 %s97, 1
        %s197 = scalar_lea.sflag [#allocation4], %s196
        %s198 = sand.u32 %s97, 1
        %s199 = smul.addr %s198, 8
        %s200 = scalar_lea.vmem [#allocation7], %s199
        %v202 = vld [vmem:[%s174] sm:$0xff]
        %v203 = vpack.c.bf16 %v202, %v202
        %v204 = vld [vmem:[#allocation5] sm:$0xff]
        %v205 = vld [vmem:[#allocation5 + $0x8] sm:$0xf]
        %v206 = vld [vmem:[#allocation5 + $0xc] sm:$0xff]
        %v207 = vld [vmem:[#allocation5 + $0x14] sm:$0xf]
        %v208 = vld [vmem:[#allocation5 + $0x18] sm:$0xff]
        %v209 = vld [vmem:[#allocation5 + $0x20] sm:$0xf]
        %v210 = vld [vmem:[#allocation5 + $0x24] sm:$0xff]
        %v211 = vld [vmem:[#allocation5 + $0x2c] sm:$0xf]
        %v212 = vld [vmem:[%s2] sm:$0x7]
        %v214 = vlaneseq
        %v215 = vshrl.u32 %v214, 7
        %v216 = vsub.s32 0, %v215
        %v217 = vrot.slane %v212, %v216
        %v218 = vlaneseq
        %v219 = vshrl.u32 %v218, 7
        %v220 = vsub.s32 1, %v219
        %v221 = vrot.slane %v212, %v220
        %v222 = vlaneseq
        %v223 = vshrl.u32 %v222, 7
        %v224 = vsub.s32 2, %v223
        %v225 = vrot.slane %v212, %v224
        %v237 = vunpack.c.l.b16 %v204
        %v238 = vunpack.c.h.b16 %v204
        %v239 = vunpack.c.l.b16 %v205
        %v240 = vunpack.c.l.b16 %v206
        %v241 = vunpack.c.h.b16 %v206
        %v242 = vunpack.c.l.b16 %v207
        %v243 = vunpack.c.l.b16 %v208
        %v244 = vunpack.c.h.b16 %v208
        %v245 = vunpack.c.l.b16 %v209
        %v246 = vunpack.c.l.b16 %v210
        %v247 = vunpack.c.h.b16 %v210
        %v248 = vunpack.c.l.b16 %v211
        %v249 = vpack.c.b16 %v240, %v237
        %v250 = vpack.c.b16 %v241, %v238
        %v251 = vpack.c.b16 %v242, %v239
        %v252 = vpack.c.b16 %v246, %v243
        %v253 = vpack.c.b16 %v247, %v244
        %v254 = vpack.c.b16 %v248, %v245
        %vm261 = vcmask 261120
        %v263 = vsel %vm261, %v203, 0
        %265 = vmatprep.subr.bf16.mxu0 0
        %266 = vmatpush1.bf16.msra.mxu0 0
        %267 = vmatprep.subr.bf16.mxu0 0
        %268 = vmatpush1.bf16.msra.mxu0 0
        %269 = vmatprep.subr.bf16.mxu0 0
        %270 = vmatpush1.bf16.msra.mxu0 0
        %271 = vmatprep.subr.bf16.mxu0 0
        %272 = vmatpush1.bf16.msra.mxu0 0
        %273 = vmatprep.subr.bf16.mxu0 0
        %274 = vmatpush1.bf16.msra.mxu0 0
        %275 = vmatprep.subr.bf16.mxu0 0
        %276 = vmatpush1.bf16.msra.mxu0 0
        %277 = vmatprep.subr.bf16.mxu0 %v253
        %278 = vmatpush1.bf16.msra.mxu0 %v252
        %279 = vmatprep.subr.bf16.mxu0 %v250
        %280 = vmatpush1.bf16.msra.mxu0 %v249
        %281 = vmatprep.subr.bf16.mxu0 0
        %282 = vmatpush2.bf16.msra.mxu0 0
        %283 = vmatprep.subr.bf16.mxu0 0
        %284 = vmatpush2.bf16.msra.mxu0 0
        %285 = vmatprep.subr.bf16.mxu0 0
        %286 = vmatpush2.bf16.msra.mxu0 0
        %287 = vmatprep.subr.bf16.mxu0 0
        %288 = vmatpush2.bf16.msra.mxu0 0
        %289 = vmatprep.subr.bf16.mxu0 0
        %290 = vmatpush2.bf16.msra.mxu0 0
        %291 = vmatprep.subr.bf16.mxu0 0
        %292 = vmatpush2.bf16.msra.mxu0 0
        %293 = vmatprep.subr.bf16.mxu0 0
        %294 = vmatpush2.bf16.msra.mxu0 0
        %295 = vmatprep.subr.bf16.mxu0 0
        %296 = vmatpush2.bf16.msra.mxu0 0
        %297 = vmatprep.mubr.bf16.mxu0 0
        %298 = vmatmul.mubr.bf16.gmra.mxu0 %v263
        %v299 = vpop.f32.mrf.mxu0
        %v300 = vadd.f32 %v217, %v299
        %v301 = vpop.f32.mrf.mxu0
        %v302 = vadd.f32 %v221, %v301
        %v303 = vpop.f32.mrf.mxu0
        %v304 = vpop.f32.mrf.mxu0
        %305 = vdwg.mxu0
        %306 = vmatprep.subr.bf16.mxu0 0
        %307 = vmatpush1.bf16.msra.mxu0 0
        %308 = vmatprep.subr.bf16.mxu0 0
        %309 = vmatpush1.bf16.msra.mxu0 0
        %310 = vmatprep.subr.bf16.mxu0 0
        %311 = vmatpush1.bf16.msra.mxu0 0
        %312 = vmatprep.subr.bf16.mxu0 0
        %313 = vmatpush1.bf16.msra.mxu0 0
        %314 = vmatprep.subr.bf16.mxu0 0
        %315 = vmatpush1.bf16.msra.mxu0 0
        %316 = vmatprep.subr.bf16.mxu0 0
        %317 = vmatpush1.bf16.msra.mxu0 0
        %318 = vmatprep.subr.bf16.mxu0 0
        %319 = vmatpush1.bf16.msra.mxu0 %v254
        %320 = vmatprep.subr.bf16.mxu0 0
        %321 = vmatpush1.bf16.msra.mxu0 %v251
        %322 = vmatprep.subr.bf16.mxu0 0
        %323 = vmatpush2.bf16.msra.mxu0 0
        %324 = vmatprep.subr.bf16.mxu0 0
        %325 = vmatpush2.bf16.msra.mxu0 0
        %326 = vmatprep.subr.bf16.mxu0 0
        %327 = vmatpush2.bf16.msra.mxu0 0
        %328 = vmatprep.subr.bf16.mxu0 0
        %329 = vmatpush2.bf16.msra.mxu0 0
        %330 = vmatprep.subr.bf16.mxu0 0
        %331 = vmatpush2.bf16.msra.mxu0 0
        %332 = vmatprep.subr.bf16.mxu0 0
        %333 = vmatpush2.bf16.msra.mxu0 0
        %334 = vmatprep.subr.bf16.mxu0 0
        %335 = vmatpush2.bf16.msra.mxu0 0
        %336 = vmatprep.subr.bf16.mxu0 0
        %337 = vmatpush2.bf16.msra.mxu0 0
        %338 = vmatprep.mubr.bf16.mxu0 0
        %339 = vmatmul.mubr.bf16.gmra.mxu0 %v263
        %v340 = vpop.f32.mrf.mxu0
        %v341 = vadd.f32 %v225, %v340
        %v342 = vpop.f32.mrf.mxu0
        %v343 = vpop.f32.mrf.mxu0
        %v344 = vpop.f32.mrf.mxu0
        %345 = vdwg.mxu0
        %v346 = vpack.c.bf16 %v300, %v300
        %v347 = vpack.c.bf16 %v302, %v302
        %v348 = vpack.c.bf16 %v341, %v341
        %349 = vmatprep.subr.bf16.mxu0 0
        %350 = vmatpush1.bf16.xpose.msra.mxu0 0
        %351 = vmatprep.subr.bf16.mxu0 0
        %352 = vmatpush1.bf16.xpose.msra.mxu0 0
        %353 = vmatprep.subr.bf16.mxu0 0
        %354 = vmatpush1.bf16.xpose.msra.mxu0 0
        %355 = vmatprep.subr.bf16.mxu0 0
        %356 = vmatpush1.bf16.xpose.msra.mxu0 0
        %357 = vmatprep.subr.bf16.mxu0 0
        %358 = vmatpush1.bf16.xpose.msra.mxu0 0
        %359 = vmatprep.subr.bf16.mxu0 0
        %360 = vmatpush1.bf16.xpose.msra.mxu0 0
        %361 = vmatprep.subr.bf16.mxu0 0
        %362 = vmatpush1.bf16.xpose.msra.mxu0 0
        %363 = vmatprep.subr.bf16.mxu0 0
        %364 = vmatpush1.bf16.xpose.msra.mxu0 %v347
        %365 = vmatprep.subr.bf16.mxu0 0
        %366 = vmatpush2.bf16.xpose.msra.mxu0 0
        %367 = vmatprep.subr.bf16.mxu0 0
        %368 = vmatpush2.bf16.xpose.msra.mxu0 0
        %369 = vmatprep.subr.bf16.mxu0 0
        %370 = vmatpush2.bf16.xpose.msra.mxu0 0
        %371 = vmatprep.subr.bf16.mxu0 0
        %372 = vmatpush2.bf16.xpose.msra.mxu0 0
        %373 = vmatprep.subr.bf16.mxu0 0
        %374 = vmatpush2.bf16.xpose.msra.mxu0 0
        %375 = vmatprep.subr.bf16.mxu0 0
        %376 = vmatpush2.bf16.xpose.msra.mxu0 0
        %377 = vmatprep.subr.bf16.mxu0 0
        %378 = vmatpush2.bf16.xpose.msra.mxu0 0
        %379 = vmatprep.subr.bf16.mxu0 0
        %380 = vmatpush2.bf16.xpose.msra.mxu0 0
        %381 = vmatprep.mubr.bf16.mxu0 0
        %382 = vmatmul.mubr.bf16.gmra.mxu0 %v346
        %v383 = vpop.f32.mrf.mxu0
        %v384 = vadd.f32 0.0, %v383
        %v385 = vpop.f32.mrf.mxu0
        %v386 = vpop.f32.mrf.mxu0
        %v387 = vpop.f32.mrf.mxu0
        %388 = vdwg.mxu0
        %v389 = vlaneseq
        %v390 = vshrl.u32 %v389, 7
        %v391 = vlaneseq
        %v392 = vand.u32 %v391, 127
        %vm393 = vcmp.gt.s32.totalorder %v392, %v390
        %vm394 = vcmp.eq.f32.partialorder %v384, 0.0
        %vm395 = vmor %vm393, %vm394
        %v396 = vsel %vm395, -inf, %v384
        %vm397 = vcmask 64512
        %v398 = vsel %vm397, %v396, -inf
        %399 = vmax.xlane.f32.xlu0 %v398
        %v400 = vpop.xlane.xlu0 %399
        %v401 = vsub.f32 %v396, %v400
        %v402 = vmul.f32 %v401, 1.442695
        %v403 = vpow.pop %v402
        %v404 = vsel %vm397, %v403, 0.0
        %405 = vadd.xlane.f32.xlu0 %v404
        %v406 = vpop.xlane.xlu0 %405
        %v407 = vrcp.pop %v406
        %v408 = vmul.f32 %v406, %v407
        %v409 = vsub.f32 2.0, %v408
        %v410 = vmul.f32 %v407, %v409
        %v411 = vmul.f32 %v403, %v410
        %v412 = vpack.c.bf16 %v411, %v411
        %v414 = vsel %vm397, %v412, 0
        %vm416 = vcmask 1043456
        %v418 = vsel %vm416, %v348, 0
        %420 = vmatprep.subr.bf16.mxu0 0
        %421 = vmatpush1.bf16.msra.mxu0 0
        %422 = vmatprep.subr.bf16.mxu0 0
        %423 = vmatpush1.bf16.msra.mxu0 0
        %424 = vmatprep.subr.bf16.mxu0 0
        %425 = vmatpush1.bf16.msra.mxu0 0
        %426 = vmatprep.subr.bf16.mxu0 0
        %427 = vmatpush1.bf16.msra.mxu0 0
        %428 = vmatprep.subr.bf16.mxu0 0
        %429 = vmatpush1.bf16.msra.mxu0 0
        %430 = vmatprep.subr.bf16.mxu0 0
        %431 = vmatpush1.bf16.msra.mxu0 0
        %432 = vmatprep.subr.bf16.mxu0 0
        %433 = vmatpush1.bf16.msra.mxu0 0
        %434 = vmatprep.subr.bf16.mxu0 0
        %435 = vmatpush1.bf16.msra.mxu0 %v418
        %436 = vmatprep.subr.bf16.mxu0 0
        %437 = vmatpush2.bf16.msra.mxu0 0
        %438 = vmatprep.subr.bf16.mxu0 0
        %439 = vmatpush2.bf16.msra.mxu0 0
        %440 = vmatprep.subr.bf16.mxu0 0
        %441 = vmatpush2.bf16.msra.mxu0 0
        %442 = vmatprep.subr.bf16.mxu0 0
        %443 = vmatpush2.bf16.msra.mxu0 0
        %444 = vmatprep.subr.bf16.mxu0 0
        %445 = vmatpush2.bf16.msra.mxu0 0
        %446 = vmatprep.subr.bf16.mxu0 0
        %447 = vmatpush2.bf16.msra.mxu0 0
        %448 = vmatprep.subr.bf16.mxu0 0
        %449 = vmatpush2.bf16.msra.mxu0 0
        %450 = vmatprep.subr.bf16.mxu0 0
        %451 = vmatpush2.bf16.msra.mxu0 0
        %452 = vmatprep.mubr.bf16.mxu0 0
        %453 = vmatmul.mubr.bf16.gmra.mxu0 %v414
        %v454 = vpop.f32.mrf.mxu0
        %v455 = vadd.f32 0.0, %v454
        %v456 = vpop.f32.mrf.mxu0
        %v457 = vpop.f32.mrf.mxu0
        %v458 = vpop.f32.mrf.mxu0
        %459 = vdwg.mxu0
        %vm460 = vcmask 130048
        %461 = vst.msk [vmem:[%s200] sm:$0xff] %vm460, %v455
        %s462 = sand.u32 %s97, 1
        %s463 = scalar_lea.sflag [#allocation4], %s462
        %s464 = sand.u32 %s97, 1
        %s465 = smul.addr %s464, 8
        %s466 = scalar_lea.vmem [#allocation7], %s465
        // Predicated region
        $region41: #{tpu_custom_call.1} parent=31 // pred_check
          %p467 = pneg %p107
        $region42: #{tpu_custom_call.1} parent=31 // pred_check_branch
          %469 = sbr.rel (%p467) target = $region44
        $region43: #{tpu_custom_call.1} parent=31 // pred_region
          %s471 = ssub.s32 128, 128
          %472 = vsyncadd %s463, %s471
          %s473 = smul.addr %s21, 128
          %s474 = scalar_lea.hbm %s3, %s473
          %s476 = sshll.u32 %s466, 4
          %s477 = int_to_ptr.vmem [resolvable:$true] %s476
          %479 = dma.vmem_to_hbm [thread:$0]  %s477, 128, %s474, %s463
        $region44: #{tpu_custom_call.1} parent=31 // pred_fallthru
          _
      $region32: #{tpu_custom_call.1} parent=5 // pred_fallthru
        _
      %p480 = scmp.le.s32.totalorder 2, %s16
      // Predicated region
      $region45: #{tpu_custom_call.1} parent=5 // pred_check
        %p481 = pneg %p480
      $region46: #{tpu_custom_call.1} parent=5 // pred_check_branch
        %483 = sbr.rel (%p481) target = $region48
      $region47: #{tpu_custom_call.1} parent=5 // pred_region
        %s484 = ssub.s32 %s16, 2
        // Predicated region
        $region49: #{tpu_custom_call.1} parent=47 // pred_check
          %p485 = pneg %p113
        $region50: #{tpu_custom_call.1} parent=47 // pred_check_branch
          %487 = sbr.rel (%p485) target = $region52
        $region51: #{tpu_custom_call.1} parent=47 // pred_region
          %s488 = sand.u32 %s98, 1
          %s489 = scalar_lea.sflag [#allocation4], %s488
          %s490 = sand.u32 %s98, 1
          %s491 = smul.addr %s490, 8
          %s492 = scalar_lea.vmem [#allocation7], %s491
          %493 = dma.done %s489, 128
        $region52: #{tpu_custom_call.1} parent=47 // pred_fallthru
          _
      $region48: #{tpu_custom_call.1} parent=5 // pred_fallthru
        _
    $region6: #{tpu_custom_call.1} parent=1 // loop_footer
      %s20 = sadd.s32 1, %s16
    $region7: #{tpu_custom_call.1} parent=1 // loop_footer_branch
      %15 = sbr.rel target = $region3
    $region8: #{tpu_custom_call.1} parent=1 // loop_exit
      _
    %494 = vsyncpa [#allocation3], 1
    %s495 = scalar_lea.sflag [#allocation3], 1
    %496 = vsyncpa %s495, 1
    %497 = vsyncpa [#allocation6], 1
    %498 = vsyncpa [#allocation4], 1
    %s499 = scalar_lea.sflag [#allocation4], 1
    %500 = vsyncpa %s499, 1

</llo_original>
